<compile_context>
chip_gen: v5e
topology: v5e:2x2
jax: 0.10.0
libtpu: 0.0.40
codegen_flags: <defaults>
</compile_context>

<pallas_src>
import jax
import jax.numpy as jnp
from jax.experimental import pallas as pl
from jax.experimental.pallas import tpu as pltpu


def _pick_seq_tile(seq_len, max_tile=1024):
    """Largest 16-aligned sequence tile <= max_tile that divides seq_len."""
    if seq_len <= max_tile:
        return seq_len
    for t in range(max_tile, 15, -1):
        if seq_len % t == 0 and t % 16 == 0:
            return t
    # Fallback: whole sequence as a single block (block == full dim is legal).
    # TODO(synk): very long, awkwardly-sized sequences may exceed VMEM here.
    return seq_len


def make_joint_kernel(num_hidden_total):
    """Kernel for `num_hidden_total` Linear+ReLU layers + fused classifier."""

    def kernel(*refs):
        # refs: x, (w, b) * num_hidden_total, fused_w, fused_b, slot_out, intent_out
        x_ref = refs[0]
        hidden_refs = refs[1:1 + 2 * num_hidden_total]
        wc_ref = refs[1 + 2 * num_hidden_total]
        bc_ref = refs[2 + 2 * num_hidden_total]
        slot_ref = refs[3 + 2 * num_hidden_total]
        intent_ref = refs[4 + 2 * num_hidden_total]

        # Cast the token tile to bf16 in VMEM (no wrapper-side HBM cast pass).
        h = x_ref[...].astype(jnp.bfloat16)                      # (TS, D)

        # Hidden MLP stack: bf16 matmul on MXU, f32 accumulate + bias + ReLU.
        for li in range(num_hidden_total):
            w = hidden_refs[2 * li][...]                         # (D_in, H) bf16
            b = hidden_refs[2 * li + 1][...]                     # (1, H)    f32
            acc = jnp.dot(h, w, preferred_element_type=jnp.float32) + b
            h = jnp.maximum(acc, 0.0).astype(jnp.bfloat16)       # ReLU (dropout = identity)

        # Fused [slot | intent | pad] classifier -> lane-dense (TS, 128) logits.
        fused = jnp.dot(h, wc_ref[...], preferred_element_type=jnp.float32) + bc_ref[...]
        slot_ref[...] = fused.astype(slot_ref.dtype)             # unmasked 128-wide stores

        # Per-tile intent partial sum on the VPU/XLU (keeps the M=1 reduction off
        # the saturated MXU slot).  The wrapper finishes the mean over all tiles,
        # so there is no cross-iteration state and both grid axes stay parallel.
        intent_ref[...] = jnp.sum(fused, axis=0, keepdims=True)

    return kernel


def joint_forward_pallas(sequence_output, params, seq_tile=None,
                         slot_dtype=jnp.bfloat16, slice_slot_output=True):
    """sequence_output: (B, S, D_bert) -- bert.last_hidden_state."""
    B, S, D = sequence_output.shape

    hidden_ws = [w.astype(jnp.bfloat16) for w in params["hidden_w"]]
    hidden_bs = [b.astype(jnp.float32) for b in params["hidden_b"]]
    num_hidden_total = len(hidden_ws)
    H = hidden_ws[-1].shape[1]

    slot_w, slot_b = params["slot_w"], params["slot_b"]
    intent_w, intent_b = params["intent_w"], params["intent_b"]
    slot_num = slot_w.shape[1]
    intent_num = intent_w.shape[1]

    # Fuse slot+intent classifiers into one lane-padded (H, C_pad) matmul.
    # Keep C_pad at 128 -- padding to 256 would only double the slot writeback.
    C = slot_num + intent_num
    C_pad = ((C + 127) // 128) * 128
    fused_w = jnp.zeros((H, C_pad), jnp.float32)
    fused_w = fused_w.at[:, :slot_num].set(slot_w)
    fused_w = fused_w.at[:, slot_num:C].set(intent_w)
    fused_w = fused_w.astype(jnp.bfloat16)
    fused_b = jnp.zeros((1, C_pad), jnp.float32)
    fused_b = fused_b.at[:, :slot_num].set(slot_b)
    fused_b = fused_b.at[:, slot_num:C].set(intent_b)

    if seq_tile is None:
        seq_tile = _pick_seq_tile(S)
    assert S % seq_tile == 0, "sequence length must be divisible by the seq tile"
    n_seq_tiles = S // seq_tile

    # Input kept in its native dtype; the kernel casts tiles to bf16 in VMEM.
    x = sequence_output

    flat_args = [x]
    for w, b in zip(hidden_ws, hidden_bs):
        flat_args += [w, b]
    flat_args += [fused_w, fused_b]

    # BlockSpecs: token tiles for x / slot output; weights VMEM-resident with a
    # constant index_map and a SINGLE pipeline buffer (no wasted double-buffering).
    const_map = lambda bi, ti: (0, 0)

    def resident(shape):
        return pl.BlockSpec(shape, const_map, pipeline_mode=pl.Buffered(1))

    in_specs = [pl.BlockSpec((None, seq_tile, D), lambda bi, ti: (bi, ti, 0))]
    for w, b in zip(hidden_ws, hidden_bs):
        in_specs.append(resident(w.shape))
        in_specs.append(resident(b.shape))
    in_specs.append(resident(fused_w.shape))
    in_specs.append(resident(fused_b.shape))

    out_specs = (
        # Padded bf16 slot logits (lane-dense 128-wide writeback).
        pl.BlockSpec((None, seq_tile, C_pad), lambda bi, ti: (bi, ti, 0)),
        # Per-seq-tile intent partial sums (both grid axes independent).
        pl.BlockSpec((None, None, 1, C_pad), lambda bi, ti: (bi, ti, 0, 0)),
    )
    out_shape = (
        jax.ShapeDtypeStruct((B, S, C_pad), slot_dtype),
        jax.ShapeDtypeStruct((B, n_seq_tiles, 1, C_pad), jnp.float32),
    )

    # --- VMEM budget estimate -> explicit scoped limit (weights single-buffered,
    # input/output tiles double-buffered, plus live activation headroom). ---
    weight_bytes = (sum(w.size * 2 + b.size * 4 for w, b in zip(hidden_ws, hidden_bs))
                    + fused_w.size * 2 + fused_b.size * 4)
    x_itemsize = jnp.dtype(x.dtype).itemsize
    slot_itemsize = jnp.dtype(slot_dtype).itemsize
    est_vmem = (weight_bytes
                + 2 * seq_tile * D * x_itemsize
                + 2 * seq_tile * C_pad * slot_itemsize
                + 2 * C_pad * 4
                + seq_tile * (max(D, H) * 6 + C_pad * 4))
    vmem_limit = int(min(max(2 * est_vmem, 16 * 1024 * 1024), 64 * 1024 * 1024))

    # Advisory cost estimate for XLA's scheduler.
    flops = 0
    in_dim = D
    for w in hidden_ws:
        flops += 2 * B * S * in_dim * w.shape[1]
        in_dim = w.shape[1]
    flops += 2 * B * S * H * C_pad
    bytes_accessed = (
        x.size * x_itemsize
        + weight_bytes
        + B * S * C_pad * slot_itemsize
        + B * n_seq_tiles * C_pad * 4
    )

    kernel = make_joint_kernel(num_hidden_total)

    slot_pad, intent_partials = pl.pallas_call(
        kernel,
        out_shape=out_shape,
        grid_spec=pltpu.PrefetchScalarGridSpec(
            num_scalar_prefetch=0,
            grid=(B, n_seq_tiles),
            in_specs=in_specs,
            out_specs=out_specs,
        ),
        compiler_params=pltpu.CompilerParams(
            dimension_semantics=("parallel", "parallel"),
            vmem_limit_bytes=vmem_limit),
        cost_estimate=pl.CostEstimate(
            flops=flops, transcendentals=0, bytes_accessed=bytes_accessed),
    )(*flat_args)

    # Finish the intent mean: sum the per-tile partial sums and scale by 1/S
    # (tiny (B, n_tiles, 128) reduction; linear classifier commutes with mean).
    intent_full = intent_partials[:, :, 0, :].sum(axis=1) * (1.0 / S)
    intent_logits = intent_full[:, slot_num:C]

    if slice_slot_output:
        # NOTE: this slice is an extra HBM pass over the largest output; pass
        # slice_slot_output=False and read columns [0, slot_num) of the padded
        # bf16 slab directly in the consumer to avoid it.
        slot_logits = slot_pad[:, :, :slot_num]
    else:
        slot_logits = slot_pad
    return slot_logits, intent_logits


def init_params(key, bert_hidden, hidden, num_hidden_layers, intent_num, slot_num):
    """Deterministic synthetic parameters matching the module's __init__ shapes."""
    n_hidden_total = 1 + num_hidden_layers  # first layer + num_hidden_layers extras
    keys = jax.random.split(key, 2 * n_hidden_total + 4)
    ki = 0
    hidden_w, hidden_b = [], []
    in_dim = bert_hidden
    for _ in range(n_hidden_total):
        hidden_w.append(0.02 * jax.random.normal(keys[ki], (in_dim, hidden), jnp.float32)); ki += 1
        hidden_b.append(0.02 * jax.random.normal(keys[ki], (1, hidden), jnp.float32)); ki += 1
        in_dim = hidden
    slot_w = 0.02 * jax.random.normal(keys[ki], (hidden, slot_num), jnp.float32); ki += 1
    slot_b = 0.02 * jax.random.normal(keys[ki], (1, slot_num), jnp.float32); ki += 1
    intent_w = 0.02 * jax.random.normal(keys[ki], (hidden, intent_num), jnp.float32); ki += 1
    intent_b = 0.02 * jax.random.normal(keys[ki], (1, intent_num), jnp.float32); ki += 1
    return dict(hidden_w=hidden_w, hidden_b=hidden_b,
                slot_w=slot_w, slot_b=slot_b,
                intent_w=intent_w, intent_b=intent_b)


def joint_forward_ref(sequence_output, params):
    """Pure-JAX float32 reference of the PyTorch forward (eval mode)."""
    h = sequence_output
    for w, b in zip(params["hidden_w"], params["hidden_b"]):
        h = jax.nn.relu(h @ w + b)
    slot_logits = h @ params["slot_w"] + params["slot_b"]
    pooled = h.mean(axis=1)
    intent_logits = pooled @ params["intent_w"] + params["intent_b"]
    return slot_logits, intent_logits


if __name__ == "__main__":
    # Small shapes consistent with the module (scaled down):
    B, S = 2, 8                 # batch, sequence length
    BERT_HIDDEN = 32            # bert.config.hidden_size (scaled down)
    HIDDEN = 64                 # hidden_size (scaled down from 512)
    NUM_HIDDEN_LAYERS = 3       # extra hidden layers (module default)
    INTENT_NUM, SLOT_NUM = 7, 11

    key = jax.random.PRNGKey(0)
    k_x, k_p = jax.random.split(key)

    # Simulated bert(input_ids, attention_mask).last_hidden_state
    sequence_output = jax.random.normal(k_x, (B, S, BERT_HIDDEN), jnp.float32)
    params = init_params(k_p, BERT_HIDDEN, HIDDEN, NUM_HIDDEN_LAYERS,
                         INTENT_NUM, SLOT_NUM)

    slot_logits, intent_logits = joint_forward_pallas(sequence_output, params)
    jax.block_until_ready((slot_logits, intent_logits))

    slot_ref, intent_ref = joint_forward_ref(sequence_output, params)
    assert slot_logits.shape == (B, S, SLOT_NUM)
    assert intent_logits.shape == (B, INTENT_NUM)
    # bf16 MXU inputs / bf16 slot writeback vs pure-f32 reference -> loose tolerance.
    assert jnp.allclose(slot_logits.astype(jnp.float32), slot_ref, atol=2e-2, rtol=2e-2)
    assert jnp.allclose(intent_logits.astype(jnp.float32), intent_ref, atol=2e-2, rtol=2e-2)

    print("KERNEL_OK")
</pallas_src>

<mosaic_0001>
module attributes {stable_mosaic.version = 11 : i64} {
  func.func @kernel(%arg0: i32, %arg1: i32, %arg2: memref<1x8x32xf32, #tpu.memory_space<vmem>>, %arg3: memref<32x64xbf16, #tpu.memory_space<vmem>>, %arg4: memref<1x64xf32, #tpu.memory_space<vmem>>, %arg5: memref<64x64xbf16, #tpu.memory_space<vmem>>, %arg6: memref<1x64xf32, #tpu.memory_space<vmem>>, %arg7: memref<64x64xbf16, #tpu.memory_space<vmem>>, %arg8: memref<1x64xf32, #tpu.memory_space<vmem>>, %arg9: memref<64x64xbf16, #tpu.memory_space<vmem>>, %arg10: memref<1x64xf32, #tpu.memory_space<vmem>>, %arg11: memref<64x128xbf16, #tpu.memory_space<vmem>>, %arg12: memref<1x128xf32, #tpu.memory_space<vmem>>, %arg13: memref<1x8x128xbf16, #tpu.memory_space<vmem>>, %arg14: memref<1x1x1x128xf32, #tpu.memory_space<vmem>>) attributes {dimension_semantics = [#tpu.dimension_semantics<parallel>, #tpu.dimension_semantics<parallel>], iteration_bounds = array<i64: 2, 1>, scalar_prefetch = 0 : i64, scratch_operands = 0 : i64, tpu.core_type = #tpu.core_type<tc>, window_params = [{transform_indices = @transform_0, window_bounds = array<i64: 1, 8, 32>}, {pipeline_mode = #tpu.pipeline_mode<synchronous>, transform_indices = @transform_1, window_bounds = array<i64: 32, 64>}, {pipeline_mode = #tpu.pipeline_mode<synchronous>, transform_indices = @transform_2, window_bounds = array<i64: 1, 64>}, {pipeline_mode = #tpu.pipeline_mode<synchronous>, transform_indices = @transform_3, window_bounds = array<i64: 64, 64>}, {pipeline_mode = #tpu.pipeline_mode<synchronous>, transform_indices = @transform_4, window_bounds = array<i64: 1, 64>}, {pipeline_mode = #tpu.pipeline_mode<synchronous>, transform_indices = @transform_5, window_bounds = array<i64: 64, 64>}, {pipeline_mode = #tpu.pipeline_mode<synchronous>, transform_indices = @transform_6, window_bounds = array<i64: 1, 64>}, {pipeline_mode = #tpu.pipeline_mode<synchronous>, transform_indices = @transform_7, window_bounds = array<i64: 64, 64>}, {pipeline_mode = #tpu.pipeline_mode<synchronous>, transform_indices = @transform_8, window_bounds = array<i64: 1, 64>}, {pipeline_mode = #tpu.pipeline_mode<synchronous>, transform_indices = @transform_9, window_bounds = array<i64: 64, 128>}, {pipeline_mode = #tpu.pipeline_mode<synchronous>, transform_indices = @transform_10, window_bounds = array<i64: 1, 128>}, {transform_indices = @transform_11, window_bounds = array<i64: 1, 8, 128>}, {transform_indices = @transform_12, window_bounds = array<i64: 1, 1, 1, 128>}]} {
    %c0 = arith.constant 0 : index
    %c0_0 = arith.constant 0 : index
    %c0_1 = arith.constant 0 : index
    %0 = vector.load %arg2[%c0, %c0_0, %c0_1] : memref<1x8x32xf32, #tpu.memory_space<vmem>>, vector<1x8x32xf32>
    %1 = vector.shape_cast %0 : vector<1x8x32xf32> to vector<8x32xf32>
    %2 = arith.truncf %1 : vector<8x32xf32> to vector<8x32xbf16>
    %c0_2 = arith.constant 0 : index
    %c0_3 = arith.constant 0 : index
    %3 = vector.load %arg3[%c0_2, %c0_3] : memref<32x64xbf16, #tpu.memory_space<vmem>>, vector<32x64xbf16>
    %c0_4 = arith.constant 0 : index
    %c0_5 = arith.constant 0 : index
    %4 = vector.load %arg4[%c0_4, %c0_5] : memref<1x64xf32, #tpu.memory_space<vmem>>, vector<1x64xf32>
    %cst = arith.constant dense<0.000000e+00> : vector<8x64xf32>
    %5 = tpu.matmul %2, %3, %cst {dimension_numbers = #tpu.dot_dimension_numbers<[1], [0], [0], [1], [0, 0, 1, 1], [], []>} : vector<8x32xbf16>, vector<32x64xbf16>, vector<8x64xf32> -> vector<8x64xf32>
    %6 = vector.broadcast %4 : vector<1x64xf32> to vector<8x64xf32>
    %7 = arith.addf %5, %6 : vector<8x64xf32>
    %cst_6 = arith.constant 0.000000e+00 : f32
    %8 = vector.broadcast %cst_6 : f32 to vector<8x64xf32>
    %9 = arith.maximumf %7, %8 : vector<8x64xf32>
    %10 = arith.truncf %9 : vector<8x64xf32> to vector<8x64xbf16>
    %c0_7 = arith.constant 0 : index
    %c0_8 = arith.constant 0 : index
    %11 = vector.load %arg5[%c0_7, %c0_8] : memref<64x64xbf16, #tpu.memory_space<vmem>>, vector<64x64xbf16>
    %c0_9 = arith.constant 0 : index
    %c0_10 = arith.constant 0 : index
    %12 = vector.load %arg6[%c0_9, %c0_10] : memref<1x64xf32, #tpu.memory_space<vmem>>, vector<1x64xf32>
    %cst_11 = arith.constant dense<0.000000e+00> : vector<8x64xf32>
    %13 = tpu.matmul %10, %11, %cst_11 {dimension_numbers = #tpu.dot_dimension_numbers<[1], [0], [0], [1], [0, 0, 1, 1], [], []>} : vector<8x64xbf16>, vector<64x64xbf16>, vector<8x64xf32> -> vector<8x64xf32>
    %14 = vector.broadcast %12 : vector<1x64xf32> to vector<8x64xf32>
    %15 = arith.addf %13, %14 : vector<8x64xf32>
    %cst_12 = arith.constant 0.000000e+00 : f32
    %16 = vector.broadcast %cst_12 : f32 to vector<8x64xf32>
    %17 = arith.maximumf %15, %16 : vector<8x64xf32>
    %18 = arith.truncf %17 : vector<8x64xf32> to vector<8x64xbf16>
    %c0_13 = arith.constant 0 : index
    %c0_14 = arith.constant 0 : index
    %19 = vector.load %arg7[%c0_13, %c0_14] : memref<64x64xbf16, #tpu.memory_space<vmem>>, vector<64x64xbf16>
    %c0_15 = arith.constant 0 : index
    %c0_16 = arith.constant 0 : index
    %20 = vector.load %arg8[%c0_15, %c0_16] : memref<1x64xf32, #tpu.memory_space<vmem>>, vector<1x64xf32>
    %cst_17 = arith.constant dense<0.000000e+00> : vector<8x64xf32>
    %21 = tpu.matmul %18, %19, %cst_17 {dimension_numbers = #tpu.dot_dimension_numbers<[1], [0], [0], [1], [0, 0, 1, 1], [], []>} : vector<8x64xbf16>, vector<64x64xbf16>, vector<8x64xf32> -> vector<8x64xf32>
    %22 = vector.broadcast %20 : vector<1x64xf32> to vector<8x64xf32>
    %23 = arith.addf %21, %22 : vector<8x64xf32>
    %cst_18 = arith.constant 0.000000e+00 : f32
    %24 = vector.broadcast %cst_18 : f32 to vector<8x64xf32>
    %25 = arith.maximumf %23, %24 : vector<8x64xf32>
    %26 = arith.truncf %25 : vector<8x64xf32> to vector<8x64xbf16>
    %c0_19 = arith.constant 0 : index
    %c0_20 = arith.constant 0 : index
    %27 = vector.load %arg9[%c0_19, %c0_20] : memref<64x64xbf16, #tpu.memory_space<vmem>>, vector<64x64xbf16>
    %c0_21 = arith.constant 0 : index
    %c0_22 = arith.constant 0 : index
    %28 = vector.load %arg10[%c0_21, %c0_22] : memref<1x64xf32, #tpu.memory_space<vmem>>, vector<1x64xf32>
    %cst_23 = arith.constant dense<0.000000e+00> : vector<8x64xf32>
    %29 = tpu.matmul %26, %27, %cst_23 {dimension_numbers = #tpu.dot_dimension_numbers<[1], [0], [0], [1], [0, 0, 1, 1], [], []>} : vector<8x64xbf16>, vector<64x64xbf16>, vector<8x64xf32> -> vector<8x64xf32>
    %30 = vector.broadcast %28 : vector<1x64xf32> to vector<8x64xf32>
    %31 = arith.addf %29, %30 : vector<8x64xf32>
    %cst_24 = arith.constant 0.000000e+00 : f32
    %32 = vector.broadcast %cst_24 : f32 to vector<8x64xf32>
    %33 = arith.maximumf %31, %32 : vector<8x64xf32>
    %34 = arith.truncf %33 : vector<8x64xf32> to vector<8x64xbf16>
    %c0_25 = arith.constant 0 : index
    %c0_26 = arith.constant 0 : index
    %35 = vector.load %arg11[%c0_25, %c0_26] : memref<64x128xbf16, #tpu.memory_space<vmem>>, vector<64x128xbf16>
    %cst_27 = arith.constant dense<0.000000e+00> : vector<8x128xf32>
    %36 = tpu.matmul %34, %35, %cst_27 {dimension_numbers = #tpu.dot_dimension_numbers<[1], [0], [0], [1], [0, 0, 1, 1], [], []>} : vector<8x64xbf16>, vector<64x128xbf16>, vector<8x128xf32> -> vector<8x128xf32>
    %c0_28 = arith.constant 0 : index
    %c0_29 = arith.constant 0 : index
    %37 = vector.load %arg12[%c0_28, %c0_29] : memref<1x128xf32, #tpu.memory_space<vmem>>, vector<1x128xf32>
    %38 = vector.broadcast %37 : vector<1x128xf32> to vector<8x128xf32>
    %39 = arith.addf %36, %38 : vector<8x128xf32>
    %40 = arith.truncf %39 : vector<8x128xf32> to vector<8x128xbf16>
    %c0_30 = arith.constant 0 : index
    %c0_31 = arith.constant 0 : index
    %c0_32 = arith.constant 0 : index
    %41 = vector.load %arg13[%c0_30, %c0_31, %c0_32] : memref<1x8x128xbf16, #tpu.memory_space<vmem>>, vector<1x8x128xbf16>
    %42 = vector.shape_cast %41 : vector<1x8x128xbf16> to vector<8x128xbf16>
    %43 = vector.shape_cast %40 : vector<8x128xbf16> to vector<1x8x128xbf16>
    tpu.vector_store %arg13[%c0_30, %c0_31, %c0_32], %43 {strides = array<i32>} : memref<1x8x128xbf16, #tpu.memory_space<vmem>>, vector<1x8x128xbf16>,
    %cst_33 = arith.constant dense<0.000000e+00> : vector<128xf32>
    %44 = vector.multi_reduction <add>, %39, %cst_33 [0] : vector<8x128xf32> to vector<128xf32>
    %45 = vector.shape_cast %44 : vector<128xf32> to vector<1x128xf32>
    %c0_34 = arith.constant 0 : index
    %c0_35 = arith.constant 0 : index
    %c0_36 = arith.constant 0 : index
    %c0_37 = arith.constant 0 : index
    %46 = vector.load %arg14[%c0_34, %c0_35, %c0_36, %c0_37] : memref<1x1x1x128xf32, #tpu.memory_space<vmem>>, vector<1x1x1x128xf32>
    %47 = vector.shape_cast %46 : vector<1x1x1x128xf32> to vector<1x128xf32>
    %48 = vector.shape_cast %45 : vector<1x128xf32> to vector<1x1x1x128xf32>
    tpu.vector_store %arg14[%c0_34, %c0_35, %c0_36, %c0_37], %48 {strides = array<i32>} : memref<1x1x1x128xf32, #tpu.memory_space<vmem>>, vector<1x1x1x128xf32>,
    return
  }
  func.func @transform_0(%arg0: i32, %arg1: i32) -> (i32, i32, i32) {
    %c0_i32 = arith.constant 0 : i32
    %c0_i32_0 = arith.constant 0 : i32
    return %arg0, %arg1, %c0_i32 : i32, i32, i32
  }
  func.func @transform_1(%arg0: i32, %arg1: i32) -> (i32, i32) {
    %c0_i32 = arith.constant 0 : i32
    %c0_i32_0 = arith.constant 0 : i32
    %c0_i32_1 = arith.constant 0 : i32
    return %c0_i32, %c0_i32_0 : i32, i32
  }
  func.func @transform_2(%arg0: i32, %arg1: i32) -> (i32, i32) {
    %c0_i32 = arith.constant 0 : i32
    %c0_i32_0 = arith.constant 0 : i32
    %c0_i32_1 = arith.constant 0 : i32
    return %c0_i32, %c0_i32_0 : i32, i32
  }
  func.func @transform_3(%arg0: i32, %arg1: i32) -> (i32, i32) {
    %c0_i32 = arith.constant 0 : i32
    %c0_i32_0 = arith.constant 0 : i32
    %c0_i32_1 = arith.constant 0 : i32
    return %c0_i32, %c0_i32_0 : i32, i32
  }
  func.func @transform_4(%arg0: i32, %arg1: i32) -> (i32, i32) {
    %c0_i32 = arith.constant 0 : i32
    %c0_i32_0 = arith.constant 0 : i32
    %c0_i32_1 = arith.constant 0 : i32
    return %c0_i32, %c0_i32_0 : i32, i32
  }
  func.func @transform_5(%arg0: i32, %arg1: i32) -> (i32, i32) {
    %c0_i32 = arith.constant 0 : i32
    %c0_i32_0 = arith.constant 0 : i32
    %c0_i32_1 = arith.constant 0 : i32
    return %c0_i32, %c0_i32_0 : i32, i32
  }
  func.func @transform_6(%arg0: i32, %arg1: i32) -> (i32, i32) {
    %c0_i32 = arith.constant 0 : i32
    %c0_i32_0 = arith.constant 0 : i32
    %c0_i32_1 = arith.constant 0 : i32
    return %c0_i32, %c0_i32_0 : i32, i32
  }
  func.func @transform_7(%arg0: i32, %arg1: i32) -> (i32, i32) {
    %c0_i32 = arith.constant 0 : i32
    %c0_i32_0 = arith.constant 0 : i32
    %c0_i32_1 = arith.constant 0 : i32
    return %c0_i32, %c0_i32_0 : i32, i32
  }
  func.func @transform_8(%arg0: i32, %arg1: i32) -> (i32, i32) {
    %c0_i32 = arith.constant 0 : i32
    %c0_i32_0 = arith.constant 0 : i32
    %c0_i32_1 = arith.constant 0 : i32
    return %c0_i32, %c0_i32_0 : i32, i32
  }
  func.func @transform_9(%arg0: i32, %arg1: i32) -> (i32, i32) {
    %c0_i32 = arith.constant 0 : i32
    %c0_i32_0 = arith.constant 0 : i32
    %c0_i32_1 = arith.constant 0 : i32
    return %c0_i32, %c0_i32_0 : i32, i32
  }
  func.func @transform_10(%arg0: i32, %arg1: i32) -> (i32, i32) {
    %c0_i32 = arith.constant 0 : i32
    %c0_i32_0 = arith.constant 0 : i32
    %c0_i32_1 = arith.constant 0 : i32
    return %c0_i32, %c0_i32_0 : i32, i32
  }
  func.func @transform_11(%arg0: i32, %arg1: i32) -> (i32, i32, i32) {
    %c0_i32 = arith.constant 0 : i32
    %c0_i32_0 = arith.constant 0 : i32
    return %arg0, %arg1, %c0_i32 : i32, i32, i32
  }
  func.func @transform_12(%arg0: i32, %arg1: i32) -> (i32, i32, i32, i32) {
    %c0_i32 = arith.constant 0 : i32
    %c0_i32_0 = arith.constant 0 : i32
    %c0_i32_1 = arith.constant 0 : i32
    return %arg0, %arg1, %c0_i32, %c0_i32_0 : i32, i32, i32, i32
  }
}

</mosaic_0001>

<llo_original>
// kernel: tpu_custom_call.1
$region0: #{tpu_custom_call.1}
  #allocation0 [shape = 'u32[]', space=smem, size = 0x4, offset = 0x4, fixed_abs, tag = 'smem constant byte address 0x4 - core index']
  #allocation1 [shape = 'u32[72,128]{1,0:T(1,128)}', space=vmem, size = 0x9000, scoped, tag = 'internal scratch']
  %s0 = inlined_call_operand.hbm [shape: f32[2,8,32], index: 0, kind: input, shape index: {}]
  %s1 = inlined_call_operand.hbm [shape: bf16[32,64], index: 1, kind: input, shape index: {}]
  %s2 = inlined_call_operand.vmem [shape: f32[1,64], index: 2, kind: input, shape index: {}]
  %s3 = inlined_call_operand.hbm [shape: bf16[64,64], index: 3, kind: input, shape index: {}]
  %s4 = inlined_call_operand.vmem [shape: f32[1,64], index: 4, kind: input, shape index: {}]
  %s5 = inlined_call_operand.hbm [shape: bf16[64,64], index: 5, kind: input, shape index: {}]
  %s6 = inlined_call_operand.vmem [shape: f32[1,64], index: 6, kind: input, shape index: {}]
  %s7 = inlined_call_operand.hbm [shape: bf16[64,64], index: 7, kind: input, shape index: {}]
  %s8 = inlined_call_operand.vmem [shape: f32[1,64], index: 8, kind: input, shape index: {}]
  %s9 = inlined_call_operand.hbm [shape: bf16[64,128], index: 9, kind: input, shape index: {}]
  %s10 = inlined_call_operand.vmem [shape: f32[1,128], index: 10, kind: input, shape index: {}]
  %s11 = inlined_call_operand.hbm [shape: bf16[2,8,128], index: 11, kind: output, shape index: {0}]
  %s12 = inlined_call_operand.hbm [shape: f32[2,1,1,128], index: 12, kind: output, shape index: {1}]
  %13 = xla_tuple %s11, %s12
  %s14 = sld [smem:[#allocation0]]
  $region109: #{tpu_custom_call.1} parent=0
    _
  %s16 = ssub.s32 1, %s14
  %s17 = scalar_select 0, %s16, %s14
  $region1: #{tpu_custom_call.1} parent=0
    #allocation2 [shape = 'u8[8192]{0}', space=vmem, size = 0x2000, scoped, tag = 'input window, operand 0']
    #allocation3 [shape = 's32[2]{0}', space=sflag, size = 0x8, scoped, tag = 'scoped memory for tpu_custom_call.1']
    #allocation4 [shape = 's32[2]{0}', space=sflag, size = 0x8, scoped, tag = 'scoped memory for tpu_custom_call.1']
    #allocation5 [shape = 'u8[8192]{0}', space=vmem, size = 0x2000, scoped, tag = 'input window, operand 1, single buffered']
    #allocation6 [shape = 's32[1]{0}', space=sflag, size = 0x4, scoped, tag = 'scoped memory for tpu_custom_call.1']
    #allocation7 [shape = 'u8[16384]{0}', space=vmem, size = 0x4000, scoped, tag = 'input window, operand 3, single buffered']
    #allocation8 [shape = 'u8[16384]{0}', space=vmem, size = 0x4000, scoped, tag = 'input window, operand 5, single buffered']
    #allocation9 [shape = 's32[1]{0}', space=sflag, size = 0x4, scoped, tag = 'scoped memory for tpu_custom_call.1']
    #allocation10 [shape = 'u8[16384]{0}', space=vmem, size = 0x4000, scoped, tag = 'input window, operand 7, single buffered']
    #allocation11 [shape = 'u8[16384]{0}', space=vmem, size = 0x4000, scoped, tag = 'input window, operand 9, single buffered']
    #allocation12 [shape = 's32[1]{0}', space=sflag, size = 0x4, scoped, tag = 'scoped memory for tpu_custom_call.1']
    #allocation13 [shape = 'u8[4096]{0}', space=vmem, size = 0x1000, scoped, tag = 'output window, operand 0']
    #allocation14 [shape = 'u8[1024]{0}', space=vmem, size = 0x400, scoped, tag = 'output window, operand 1']
    #allocation15 [shape = 's32[2]{0}', space=sflag, size = 0x8, scoped, tag = 'scoped memory for tpu_custom_call.1']
    %18 = vsyncpa [#allocation3], 0
    %s19 = scalar_lea.sflag [#allocation3], 1
    %20 = vsyncpa %s19, 0
    %21 = vsyncpa [#allocation6], 0
    %22 = vsyncpa [#allocation9], 0
    %23 = vsyncpa [#allocation12], 0
    %24 = vsyncpa [#allocation4], 0
    %s25 = scalar_lea.sflag [#allocation4], 1
    %26 = vsyncpa %s25, 0
    %27 = vsyncpa [#allocation15], 0
    %s28 = scalar_lea.sflag [#allocation15], 1
    %29 = vsyncpa %s28, 0
    loop: start=0, step=1, limit=4
    $region2: #{tpu_custom_call.1} parent=1 // loop_pre_header
      _
    $region3: #{tpu_custom_call.1} parent=1 // loop_header
      %s31 = sphi 0, %s35
      %p32 = scmp.ge.s32.totalorder %s31, 4
      %s38 = sphi 0, %s50
      %s39 = sphi 0, %s46
      %s40 = sphi 0, %s38
      %s41 = sphi 0, %s39
      %s42 = sphi 0, %s40
      %s43 = sphi 0, %s41
      %s55 = sphi 0, %s57
      %s58 = sphi 0, %s55
      %s59 = sphi 0, %s58
      %s75 = sphi 0, %s59
      %s79 = sphi 0, %s79
      %s81 = sphi 0, %s79
      %s82 = sphi 0, %s81
      %s96 = sphi 0, %s82
      %s100 = sphi 0, %s100
      %s102 = sphi 0, %s100
      %s103 = sphi 0, %s102
      %s117 = sphi 0, %s103
      %s121 = sphi 0, %s121
      %s123 = sphi 0, %s121
      %s124 = sphi 0, %s123
      %s138 = sphi 0, %s124
      %s142 = sphi 0, %s142
      %s144 = sphi 0, %s142
      %s145 = sphi 0, %s144
      %s159 = sphi 0, %s145
      %s163 = sphi 0, %s163
      %s165 = sphi 0, %s163
      %s166 = sphi 0, %s165
      %s180 = sphi 0, %s166
      %s184 = sphi 0, %s184
      %s186 = sphi 0, %s184
      %s187 = sphi 0, %s186
      %s201 = sphi 0, %s187
      %s205 = sphi 0, %s205
      %s207 = sphi 0, %s205
      %s208 = sphi 0, %s207
      %s222 = sphi 0, %s208
      %s226 = sphi 0, %s226
      %s228 = sphi 0, %s226
      %s229 = sphi 0, %s228
      %s243 = sphi 0, %s229
      %s247 = sphi 0, %s247
      %s249 = sphi 0, %s247
      %s250 = sphi 0, %s249
      %s264 = sphi 0, %s250
      %s268 = sphi 0, %s268
      %s270 = sphi 0, %s268
      %s271 = sphi 0, %s270
      %s285 = sphi 0, %s271
      %s293 = sphi 0, %s295
      %s296 = sphi 0, %s293
      %s297 = sphi 0, %s296
      %s313 = sphi 0, %s297
      %s321 = sphi 0, %s323
      %s324 = sphi 0, %s321
      %s325 = sphi 0, %s324
      %s341 = sphi 0, %s325
    $region4: #{tpu_custom_call.1} parent=1 // loop_header_branch
      %34 = sbr.rel (%p32) target = $region8
    $region5: #{tpu_custom_call.1} parent=1 // loop_body
      %s36 = ssub.s32 %s31, 1
      %s37 = ssub.s32 %s31, 2
      %s44 = sadd.s32 1, %s39
      %p45 = scmp.ge.s32.totalorder %s44, 1
      %s46 = scalar_select %p45, 0, %s44
      %s47 = sadd.s32 1, %s38
      %s48 = scalar_select %p45, %s47, %s38
      %p49 = scmp.ge.s32.totalorder %s48, 2
      %s50 = scalar_select %p49, 0, %s48
      %s51 = ssub.s32 %s38, %s50
      %s52 = ssub.s32 %s39, %s46
      %s53 = sor.u32 %s51, %s52
      %p54 = scmp.eq.s32.totalorder %s53, 0
      %s56 = sadd.s32 %s55, 1
      %s57 = scalar_select %p54, %s55, %s56
      %p60 = pneg %p54
      %p61 = scmp.eq.s32.totalorder %s31, 1
      %p62 = por %p60, %p61
      %p63 = scmp.ne.s32.totalorder %s55, %s58
      %p64 = scmp.eq.s32.totalorder %s31, 0
      %p65 = por %p63, %p64
      %p66 = scmp.ne.s32.totalorder %s55, %s58
      %p67 = scmp.eq.s32.totalorder %s36, 1
      %p68 = por %p66, %p67
      %p69 = scmp.ne.s32.totalorder %s58, %s59
      %p70 = scmp.eq.s32.totalorder %s36, 0
      %p71 = por %p69, %p70
      %p72 = scmp.ne.s32.totalorder %s58, %s59
      %p73 = scmp.eq.s32.totalorder %s37, 1
      %p74 = por %p72, %p73
      %p76 = scmp.ne.s32.totalorder %s59, %s75
      %p77 = scmp.eq.s32.totalorder %s37, 0
      %p78 = por %p76, %p77
      %s80 = sadd.s32 %s79, 1
      %p83 = scmp.eq.s32.totalorder %s31, 1
      %p84 = scmp.ne.s32.totalorder %s79, %s81
      %p85 = scmp.eq.s32.totalorder %s31, 0
      %p86 = por %p84, %p85
      %p87 = scmp.ne.s32.totalorder %s79, %s81
      %p88 = scmp.eq.s32.totalorder %s36, 1
      %p89 = por %p87, %p88
      %p90 = scmp.ne.s32.totalorder %s81, %s82
      %p91 = scmp.eq.s32.totalorder %s36, 0
      %p92 = por %p90, %p91
      %p93 = scmp.ne.s32.totalorder %s81, %s82
      %p94 = scmp.eq.s32.totalorder %s37, 1
      %p95 = por %p93, %p94
      %p97 = scmp.ne.s32.totalorder %s82, %s96
      %p98 = scmp.eq.s32.totalorder %s37, 0
      %p99 = por %p97, %p98
      %s101 = sadd.s32 %s100, 1
      %p104 = scmp.eq.s32.totalorder %s31, 1
      %p105 = scmp.ne.s32.totalorder %s100, %s102
      %p106 = scmp.eq.s32.totalorder %s31, 0
      %p107 = por %p105, %p106
      %p108 = scmp.ne.s32.totalorder %s100, %s102
      %p109 = scmp.eq.s32.totalorder %s36, 1
      %p110 = por %p108, %p109
      %p111 = scmp.ne.s32.totalorder %s102, %s103
      %p112 = scmp.eq.s32.totalorder %s36, 0
      %p113 = por %p111, %p112
      %p114 = scmp.ne.s32.totalorder %s102, %s103
      %p115 = scmp.eq.s32.totalorder %s37, 1
      %p116 = por %p114, %p115
      %p118 = scmp.ne.s32.totalorder %s103, %s117
      %p119 = scmp.eq.s32.totalorder %s37, 0
      %p120 = por %p118, %p119
      %s122 = sadd.s32 %s121, 1
      %p125 = scmp.eq.s32.totalorder %s31, 1
      %p126 = scmp.ne.s32.totalorder %s121, %s123
      %p127 = scmp.eq.s32.totalorder %s31, 0
      %p128 = por %p126, %p127
      %p129 = scmp.ne.s32.totalorder %s121, %s123
      %p130 = scmp.eq.s32.totalorder %s36, 1
      %p131 = por %p129, %p130
      %p132 = scmp.ne.s32.totalorder %s123, %s124
      %p133 = scmp.eq.s32.totalorder %s36, 0
      %p134 = por %p132, %p133
      %p135 = scmp.ne.s32.totalorder %s123, %s124
      %p136 = scmp.eq.s32.totalorder %s37, 1
      %p137 = por %p135, %p136
      %p139 = scmp.ne.s32.totalorder %s124, %s138
      %p140 = scmp.eq.s32.totalorder %s37, 0
      %p141 = por %p139, %p140
      %s143 = sadd.s32 %s142, 1
      %p146 = scmp.eq.s32.totalorder %s31, 1
      %p147 = scmp.ne.s32.totalorder %s142, %s144
      %p148 = scmp.eq.s32.totalorder %s31, 0
      %p149 = por %p147, %p148
      %p150 = scmp.ne.s32.totalorder %s142, %s144
      %p151 = scmp.eq.s32.totalorder %s36, 1
      %p152 = por %p150, %p151
      %p153 = scmp.ne.s32.totalorder %s144, %s145
      %p154 = scmp.eq.s32.totalorder %s36, 0
      %p155 = por %p153, %p154
      %p156 = scmp.ne.s32.totalorder %s144, %s145
      %p157 = scmp.eq.s32.totalorder %s37, 1
      %p158 = por %p156, %p157
      %p160 = scmp.ne.s32.totalorder %s145, %s159
      %p161 = scmp.eq.s32.totalorder %s37, 0
      %p162 = por %p160, %p161
      %s164 = sadd.s32 %s163, 1
      %p167 = scmp.eq.s32.totalorder %s31, 1
      %p168 = scmp.ne.s32.totalorder %s163, %s165
      %p169 = scmp.eq.s32.totalorder %s31, 0
      %p170 = por %p168, %p169
      %p171 = scmp.ne.s32.totalorder %s163, %s165
      %p172 = scmp.eq.s32.totalorder %s36, 1
      %p173 = por %p171, %p172
      %p174 = scmp.ne.s32.totalorder %s165, %s166
      %p175 = scmp.eq.s32.totalorder %s36, 0
      %p176 = por %p174, %p175
      %p177 = scmp.ne.s32.totalorder %s165, %s166
      %p178 = scmp.eq.s32.totalorder %s37, 1
      %p179 = por %p177, %p178
      %p181 = scmp.ne.s32.totalorder %s166, %s180
      %p182 = scmp.eq.s32.totalorder %s37, 0
      %p183 = por %p181, %p182
      %s185 = sadd.s32 %s184, 1
      %p188 = scmp.eq.s32.totalorder %s31, 1
      %p189 = scmp.ne.s32.totalorder %s184, %s186
      %p190 = scmp.eq.s32.totalorder %s31, 0
      %p191 = por %p189, %p190
      %p192 = scmp.ne.s32.totalorder %s184, %s186
      %p193 = scmp.eq.s32.totalorder %s36, 1
      %p194 = por %p192, %p193
      %p195 = scmp.ne.s32.totalorder %s186, %s187
      %p196 = scmp.eq.s32.totalorder %s36, 0
      %p197 = por %p195, %p196
      %p198 = scmp.ne.s32.totalorder %s186, %s187
      %p199 = scmp.eq.s32.totalorder %s37, 1
      %p200 = por %p198, %p199
      %p202 = scmp.ne.s32.totalorder %s187, %s201
      %p203 = scmp.eq.s32.totalorder %s37, 0
      %p204 = por %p202, %p203
      %s206 = sadd.s32 %s205, 1
      %p209 = scmp.eq.s32.totalorder %s31, 1
      %p210 = scmp.ne.s32.totalorder %s205, %s207
      %p211 = scmp.eq.s32.totalorder %s31, 0
      %p212 = por %p210, %p211
      %p213 = scmp.ne.s32.totalorder %s205, %s207
      %p214 = scmp.eq.s32.totalorder %s36, 1
      %p215 = por %p213, %p214
      %p216 = scmp.ne.s32.totalorder %s207, %s208
      %p217 = scmp.eq.s32.totalorder %s36, 0
      %p218 = por %p216, %p217
      %p219 = scmp.ne.s32.totalorder %s207, %s208
      %p220 = scmp.eq.s32.totalorder %s37, 1
      %p221 = por %p219, %p220
      %p223 = scmp.ne.s32.totalorder %s208, %s222
      %p224 = scmp.eq.s32.totalorder %s37, 0
      %p225 = por %p223, %p224
      %s227 = sadd.s32 %s226, 1
      %p230 = scmp.eq.s32.totalorder %s31, 1
      %p231 = scmp.ne.s32.totalorder %s226, %s228
      %p232 = scmp.eq.s32.totalorder %s31, 0
      %p233 = por %p231, %p232
      %p234 = scmp.ne.s32.totalorder %s226, %s228
      %p235 = scmp.eq.s32.totalorder %s36, 1
      %p236 = por %p234, %p235
      %p237 = scmp.ne.s32.totalorder %s228, %s229
      %p238 = scmp.eq.s32.totalorder %s36, 0
      %p239 = por %p237, %p238
      %p240 = scmp.ne.s32.totalorder %s228, %s229
      %p241 = scmp.eq.s32.totalorder %s37, 1
      %p242 = por %p240, %p241
      %p244 = scmp.ne.s32.totalorder %s229, %s243
      %p245 = scmp.eq.s32.totalorder %s37, 0
      %p246 = por %p244, %p245
      %s248 = sadd.s32 %s247, 1
      %p251 = scmp.eq.s32.totalorder %s31, 1
      %p252 = scmp.ne.s32.totalorder %s247, %s249
      %p253 = scmp.eq.s32.totalorder %s31, 0
      %p254 = por %p252, %p253
      %p255 = scmp.ne.s32.totalorder %s247, %s249
      %p256 = scmp.eq.s32.totalorder %s36, 1
      %p257 = por %p255, %p256
      %p258 = scmp.ne.s32.totalorder %s249, %s250
      %p259 = scmp.eq.s32.totalorder %s36, 0
      %p260 = por %p258, %p259
      %p261 = scmp.ne.s32.totalorder %s249, %s250
      %p262 = scmp.eq.s32.totalorder %s37, 1
      %p263 = por %p261, %p262
      %p265 = scmp.ne.s32.totalorder %s250, %s264
      %p266 = scmp.eq.s32.totalorder %s37, 0
      %p267 = por %p265, %p266
      %s269 = sadd.s32 %s268, 1
      %p272 = scmp.eq.s32.totalorder %s31, 1
      %p273 = scmp.ne.s32.totalorder %s268, %s270
      %p274 = scmp.eq.s32.totalorder %s31, 0
      %p275 = por %p273, %p274
      %p276 = scmp.ne.s32.totalorder %s268, %s270
      %p277 = scmp.eq.s32.totalorder %s36, 1
      %p278 = por %p276, %p277
      %p279 = scmp.ne.s32.totalorder %s270, %s271
      %p280 = scmp.eq.s32.totalorder %s36, 0
      %p281 = por %p279, %p280
      %p282 = scmp.ne.s32.totalorder %s270, %s271
      %p283 = scmp.eq.s32.totalorder %s37, 1
      %p284 = por %p282, %p283
      %p286 = scmp.ne.s32.totalorder %s271, %s285
      %p287 = scmp.eq.s32.totalorder %s37, 0
      %p288 = por %p286, %p287
      %s289 = ssub.s32 %s38, %s50
      %s290 = ssub.s32 %s39, %s46
      %s291 = sor.u32 %s289, %s290
      %p292 = scmp.eq.s32.totalorder %s291, 0
      %s294 = sadd.s32 %s293, 1
      %s295 = scalar_select %p292, %s293, %s294
      %p298 = pneg %p292
      %p299 = scmp.eq.s32.totalorder %s31, 1
      %p300 = por %p298, %p299
      %p301 = scmp.ne.s32.totalorder %s293, %s296
      %p302 = scmp.eq.s32.totalorder %s31, 0
      %p303 = por %p301, %p302
      %p304 = scmp.ne.s32.totalorder %s293, %s296
      %p305 = scmp.eq.s32.totalorder %s36, 1
      %p306 = por %p304, %p305
      %p307 = scmp.ne.s32.totalorder %s296, %s297
      %p308 = scmp.eq.s32.totalorder %s36, 0
      %p309 = por %p307, %p308
      %p310 = scmp.ne.s32.totalorder %s296, %s297
      %p311 = scmp.eq.s32.totalorder %s37, 1
      %p312 = por %p310, %p311
      %p314 = scmp.ne.s32.totalorder %s297, %s313
      %p315 = scmp.eq.s32.totalorder %s37, 0
      %p316 = por %p314, %p315
      %s317 = ssub.s32 %s38, %s50
      %s318 = ssub.s32 %s39, %s46
      %s319 = sor.u32 %s317, %s318
      %p320 = scmp.eq.s32.totalorder %s319, 0
      %s322 = sadd.s32 %s321, 1
      %s323 = scalar_select %p320, %s321, %s322
      %p326 = pneg %p320
      %p327 = scmp.eq.s32.totalorder %s31, 1
      %p328 = por %p326, %p327
      %p329 = scmp.ne.s32.totalorder %s321, %s324
      %p330 = scmp.eq.s32.totalorder %s31, 0
      %p331 = por %p329, %p330
      %p332 = scmp.ne.s32.totalorder %s321, %s324
      %p333 = scmp.eq.s32.totalorder %s36, 1
      %p334 = por %p332, %p333
      %p335 = scmp.ne.s32.totalorder %s324, %s325
      %p336 = scmp.eq.s32.totalorder %s36, 0
      %p337 = por %p335, %p336
      %p338 = scmp.ne.s32.totalorder %s324, %s325
      %p339 = scmp.eq.s32.totalorder %s37, 1
      %p340 = por %p338, %p339
      %p342 = scmp.ne.s32.totalorder %s325, %s341
      %p343 = scmp.eq.s32.totalorder %s37, 0
      %p344 = por %p342, %p343
      %p345 = scmp.le.s32.totalorder 1, %s31
      %p346 = scmp.lt.s32.totalorder %s31, 3
      %p347 = pnand %p345, %p346
      %p348 = pneg %p347
      // Predicated region
      $region9: #{tpu_custom_call.1} parent=5 // pred_check
        _
      $region10: #{tpu_custom_call.1} parent=5 // pred_check_branch
        %350 = sbr.rel (%p347) target = $region12
      $region11: #{tpu_custom_call.1} parent=5 // pred_region
        %s351 = ssub.s32 %s31, 1
        // Predicated region
        $region13: #{tpu_custom_call.1} parent=11 // pred_check
          %p352 = pneg %p92
        $region14: #{tpu_custom_call.1} parent=11 // pred_check_branch
          %354 = sbr.rel (%p352) target = $region16
        $region15: #{tpu_custom_call.1} parent=11 // pred_region
          %356 = vsyncadd [#allocation6], 0
          %s357 = sshll.u32 %s1, 4
          %s358 = int_to_ptr.hbm [resolvable:$true] %s357
          %s359 = sshll.u32 [#allocation5], 4
          %s360 = int_to_ptr.vmem [resolvable:$true] %s359
          %365 = dma.hbm_to_vmem [thread:$0]  %s358, 256, %s360, [#allocation6], 64, 64, 4
        $region16: #{tpu_custom_call.1} parent=11 // pred_fallthru
          _
        // Predicated region
        $region17: #{tpu_custom_call.1} parent=11 // pred_check
          %p366 = pneg %p113
        $region18: #{tpu_custom_call.1} parent=11 // pred_check_branch
          %368 = sbr.rel (%p366) target = $region20
        $region19: #{tpu_custom_call.1} parent=11 // pred_region
          _
        $region20: #{tpu_custom_call.1} parent=11 // pred_fallthru
          _
        // Predicated region
        $region21: #{tpu_custom_call.1} parent=11 // pred_check
          %p369 = pneg %p134
        $region22: #{tpu_custom_call.1} parent=11 // pred_check_branch
          %371 = sbr.rel (%p369) target = $region24
        $region23: #{tpu_custom_call.1} parent=11 // pred_region
          %373 = vsyncadd [#allocation6], 0
          %s374 = sshll.u32 %s3, 4
          %s375 = int_to_ptr.hbm [resolvable:$true] %s374
          %s376 = sshll.u32 [#allocation7], 4
          %s377 = int_to_ptr.vmem [resolvable:$true] %s376
          %382 = dma.hbm_to_vmem [thread:$0]  %s375, 512, %s377, [#allocation6], 64, 64, 4
        $region24: #{tpu_custom_call.1} parent=11 // pred_fallthru
          _
        // Predicated region
        $region25: #{tpu_custom_call.1} parent=11 // pred_check
          %p383 = pneg %p155
        $region26: #{tpu_custom_call.1} parent=11 // pred_check_branch
          %385 = sbr.rel (%p383) target = $region28
        $region27: #{tpu_custom_call.1} parent=11 // pred_region
          _
        $region28: #{tpu_custom_call.1} parent=11 // pred_fallthru
          _
        // Predicated region
        $region29: #{tpu_custom_call.1} parent=11 // pred_check
          %p386 = pneg %p176
        $region30: #{tpu_custom_call.1} parent=11 // pred_check_branch
          %388 = sbr.rel (%p386) target = $region32
        $region31: #{tpu_custom_call.1} parent=11 // pred_region
          %390 = vsyncadd [#allocation9], 0
          %s391 = sshll.u32 %s5, 4
          %s392 = int_to_ptr.hbm [resolvable:$true] %s391
          %s393 = sshll.u32 [#allocation8], 4
          %s394 = int_to_ptr.vmem [resolvable:$true] %s393
          %399 = dma.hbm_to_vmem [thread:$0]  %s392, 512, %s394, [#allocation9], 64, 64, 4
        $region32: #{tpu_custom_call.1} parent=11 // pred_fallthru
          _
        // Predicated region
        $region33: #{tpu_custom_call.1} parent=11 // pred_check
          %p400 = pneg %p197
        $region34: #{tpu_custom_call.1} parent=11 // pred_check_branch
          %402 = sbr.rel (%p400) target = $region36
        $region35: #{tpu_custom_call.1} parent=11 // pred_region
          _
        $region36: #{tpu_custom_call.1} parent=11 // pred_fallthru
          _
        // Predicated region
        $region37: #{tpu_custom_call.1} parent=11 // pred_check
          %p403 = pneg %p218
        $region38: #{tpu_custom_call.1} parent=11 // pred_check_branch
          %405 = sbr.rel (%p403) target = $region40
        $region39: #{tpu_custom_call.1} parent=11 // pred_region
          %407 = vsyncadd [#allocation9], 0
          %s408 = sshll.u32 %s7, 4
          %s409 = int_to_ptr.hbm [resolvable:$true] %s408
          %s410 = sshll.u32 [#allocation10], 4
          %s411 = int_to_ptr.vmem [resolvable:$true] %s410
          %416 = dma.hbm_to_vmem [thread:$0]  %s409, 512, %s411, [#allocation9], 64, 64, 4
        $region40: #{tpu_custom_call.1} parent=11 // pred_fallthru
          _
        // Predicated region
        $region41: #{tpu_custom_call.1} parent=11 // pred_check
          %p417 = pneg %p239
        $region42: #{tpu_custom_call.1} parent=11 // pred_check_branch
          %419 = sbr.rel (%p417) target = $region44
        $region43: #{tpu_custom_call.1} parent=11 // pred_region
          _
        $region44: #{tpu_custom_call.1} parent=11 // pred_fallthru
          _
        // Predicated region
        $region45: #{tpu_custom_call.1} parent=11 // pred_check
          %p420 = pneg %p260
        $region46: #{tpu_custom_call.1} parent=11 // pred_check_branch
          %422 = sbr.rel (%p420) target = $region48
        $region47: #{tpu_custom_call.1} parent=11 // pred_region
          %424 = vsyncadd [#allocation12], 0
          %s425 = sshll.u32 %s9, 4
          %s426 = int_to_ptr.hbm [resolvable:$true] %s425
          %s427 = sshll.u32 [#allocation11], 4
          %s428 = int_to_ptr.vmem [resolvable:$true] %s427
          %433 = dma.hbm_to_vmem [thread:$0]  %s426, 512, %s428, [#allocation12], 64, 64, 4
        $region48: #{tpu_custom_call.1} parent=11 // pred_fallthru
          _
        // Predicated region
        $region49: #{tpu_custom_call.1} parent=11 // pred_check
          %p434 = pneg %p281
        $region50: #{tpu_custom_call.1} parent=11 // pred_check_branch
          %436 = sbr.rel (%p434) target = $region52
        $region51: #{tpu_custom_call.1} parent=11 // pred_region
          _
        $region52: #{tpu_custom_call.1} parent=11 // pred_fallthru
          _
      $region12: #{tpu_custom_call.1} parent=5 // pred_fallthru
        _
      %p437 = scmp.lt.s32.totalorder %s31, 2
      // Predicated region
      $region53: #{tpu_custom_call.1} parent=5 // pred_check
        %p438 = pneg %p437
      $region54: #{tpu_custom_call.1} parent=5 // pred_check_branch
        %440 = sbr.rel (%p438) target = $region56
      $region55: #{tpu_custom_call.1} parent=5 // pred_region
        // Predicated region
        $region57: #{tpu_custom_call.1} parent=55 // pred_check
          %p441 = pneg %p65
        $region58: #{tpu_custom_call.1} parent=55 // pred_check_branch
          %443 = sbr.rel (%p441) target = $region60
        $region59: #{tpu_custom_call.1} parent=55 // pred_region
          %s444 = sand.u32 %s55, 1
          %s445 = scalar_lea.sflag [#allocation3], %s444
          %s446 = sand.u32 %s55, 1
          %s447 = smul.addr %s446, 8
          %s448 = scalar_lea.vmem [#allocation2], %s447
          %450 = vsyncadd %s445, 0
          %s451 = sadd.s32 %s39, %s38
          %s452 = smul.addr %s451, 8
          %s453 = scalar_lea.hbm %s0, %s452
          %s455 = sshll.u32 %s453, 4
          %s456 = int_to_ptr.hbm [resolvable:$true] %s455
          %s457 = sshll.u32 %s448, 4
          %s458 = int_to_ptr.vmem [resolvable:$true] %s457
          %460 = dma.hbm_to_vmem [thread:$0]  %s456, 128, %s458, %s445
        $region60: #{tpu_custom_call.1} parent=55 // pred_fallthru
          _
      $region56: #{tpu_custom_call.1} parent=5 // pred_fallthru
        _
      %p461 = scmp.le.s32.totalorder 1, %s31
      %p462 = scmp.lt.s32.totalorder %s31, 3
      %p463 = pnand %p461, %p462
      %p464 = pneg %p463
      // Predicated region
      $region61: #{tpu_custom_call.1} parent=5 // pred_check
        _
      $region62: #{tpu_custom_call.1} parent=5 // pred_check_branch
        %466 = sbr.rel (%p463) target = $region64
      $region63: #{tpu_custom_call.1} parent=5 // pred_region
        %s467 = ssub.s32 %s31, 1
        %s468 = sand.u32 %s58, 1
        %s469 = scalar_lea.sflag [#allocation3], %s468
        %s470 = sand.u32 %s58, 1
        %s471 = smul.addr %s470, 8
        %s472 = scalar_lea.vmem [#allocation2], %s471
        // Predicated region
        $region65: #{tpu_custom_call.1} parent=63 // pred_check
          %p473 = pneg %p71
        $region66: #{tpu_custom_call.1} parent=63 // pred_check_branch
          %475 = sbr.rel (%p473) target = $region68
        $region67: #{tpu_custom_call.1} parent=63 // pred_region
          %477 = dma.done %s469, 128
        $region68: #{tpu_custom_call.1} parent=63 // pred_fallthru
          _
        // Predicated region
        $region69: #{tpu_custom_call.1} parent=63 // pred_check
          %p478 = pneg %p92
        $region70: #{tpu_custom_call.1} parent=63 // pred_check_branch
          %480 = sbr.rel (%p478) target = $region72
        $region71: #{tpu_custom_call.1} parent=63 // pred_region
          %482 = dma.done [#allocation6], 256
        $region72: #{tpu_custom_call.1} parent=63 // pred_fallthru
          _
        // Predicated region
        $region73: #{tpu_custom_call.1} parent=63 // pred_check
          %p483 = pneg %p134
        $region74: #{tpu_custom_call.1} parent=63 // pred_check_branch
          %485 = sbr.rel (%p483) target = $region76
        $region75: #{tpu_custom_call.1} parent=63 // pred_region
          %487 = dma.done [#allocation6], 512
        $region76: #{tpu_custom_call.1} parent=63 // pred_fallthru
          _
        // Predicated region
        $region77: #{tpu_custom_call.1} parent=63 // pred_check
          %p488 = pneg %p176
        $region78: #{tpu_custom_call.1} parent=63 // pred_check_branch
          %490 = sbr.rel (%p488) target = $region80
        $region79: #{tpu_custom_call.1} parent=63 // pred_region
          %492 = dma.done [#allocation9], 512
        $region80: #{tpu_custom_call.1} parent=63 // pred_fallthru
          _
        // Predicated region
        $region81: #{tpu_custom_call.1} parent=63 // pred_check
          %p493 = pneg %p218
        $region82: #{tpu_custom_call.1} parent=63 // pred_check_branch
          %495 = sbr.rel (%p493) target = $region84
        $region83: #{tpu_custom_call.1} parent=63 // pred_region
          %497 = dma.done [#allocation9], 512
        $region84: #{tpu_custom_call.1} parent=63 // pred_fallthru
          _
        // Predicated region
        $region85: #{tpu_custom_call.1} parent=63 // pred_check
          %p498 = pneg %p260
        $region86: #{tpu_custom_call.1} parent=63 // pred_check_branch
          %500 = sbr.rel (%p498) target = $region88
        $region87: #{tpu_custom_call.1} parent=63 // pred_region
          %502 = dma.done [#allocation12], 512
        $region88: #{tpu_custom_call.1} parent=63 // pred_fallthru
          _
        %s503 = sand.u32 %s58, 1
        %s504 = scalar_lea.sflag [#allocation3], %s503
        %s505 = sand.u32 %s58, 1
        %s506 = smul.addr %s505, 8
        %s507 = scalar_lea.vmem [#allocation2], %s506
        %p508 = pneg %p71
        %p509 = pneg %p68
        %p510 = pneg %p92
        %p511 = pneg %p89
        %p512 = pneg %p113
        %p513 = pneg %p110
        %p514 = pneg %p134
        %p515 = pneg %p131
        %p516 = pneg %p155
        %p517 = pneg %p152
        %p518 = pneg %p176
        %p519 = pneg %p173
        %p520 = pneg %p197
        %p521 = pneg %p194
        %p522 = pneg %p218
        %p523 = pneg %p215
        %p524 = pneg %p239
        %p525 = pneg %p236
        %p526 = pneg %p260
        %p527 = pneg %p257
        %p528 = pneg %p281
        %p529 = pneg %p278
        %p530 = pneg %p309
        %p531 = pneg %p306
        %s532 = sand.u32 %s296, 1
        %s533 = scalar_lea.sflag [#allocation4], %s532
        %s534 = sand.u32 %s296, 1
        %s535 = smul.addr %s534, 4
        %s536 = scalar_lea.vmem [#allocation13], %s535
        %p537 = pneg %p337
        %p538 = pneg %p334
        %s539 = sand.u32 %s324, 1
        %s540 = scalar_lea.sflag [#allocation15], %s539
        %s541 = sand.u32 %s324, 1
        %s542 = scalar_lea.vmem [#allocation14], %s541
        %v544 = vld [vmem:[%s472] sm:$0xff]
        %v545 = vpack.c.bf16 %v544, %v544
        %v546 = vld [vmem:[#allocation5] sm:$0xf]
        %v547 = vld [vmem:[#allocation5 + $0x4] sm:$0xf]
        %v548 = vld [vmem:[#allocation5 + $0x8] sm:$0xf]
        %v549 = vld [vmem:[#allocation5 + $0xc] sm:$0xf]
        %v550 = vld [vmem:[%s2] sm:$0x1]
        %v552 = vperm.slane %v550, 0
        %v558 = vunpack.c.l.b16 %v546
        %v559 = vunpack.c.l.b16 %v547
        %v560 = vunpack.c.l.b16 %v548
        %v561 = vunpack.c.l.b16 %v549
        %v562 = vpack.c.b16 %v559, %v558
        %v563 = vpack.c.b16 %v561, %v560
        %vm566 = vcmask 261120
        %v568 = vsel %vm566, %v545, 0
        %570 = vmatpush.bf16.msra.mxu0 0
        %571 = vmatpush.bf16.msra.mxu0 0
        %572 = vmatpush.bf16.msra.mxu0 0
        %573 = vmatpush.bf16.msra.mxu0 0
        %574 = vmatpush.bf16.msra.mxu0 0
        %575 = vmatpush.bf16.msra.mxu0 0
        %576 = vmatpush.bf16.msra.mxu0 %v563
        %577 = vmatpush.bf16.msra.mxu0 %v562
        %578 = vmatmul.bf16.gmra.mxu0 %v568
        %v579 = vpop.f32.mrf.mxu0
        %v580 = vadd.f32 %v552, %v579
        %v581 = vpop.f32.mrf.mxu0
        %582 = vdwg.mxu0
        %v583 = vmax.f32 %v580, 0.0
        %v584 = vpack.c.bf16 %v583, %v583
        %v585 = vld [vmem:[#allocation7] sm:$0xf]
        %v586 = vld [vmem:[#allocation7 + $0x4] sm:$0xf]
        %v587 = vld [vmem:[#allocation7 + $0x8] sm:$0xf]
        %v588 = vld [vmem:[#allocation7 + $0xc] sm:$0xf]
        %v589 = vld [vmem:[#allocation7 + $0x10] sm:$0xf]
        %v590 = vld [vmem:[#allocation7 + $0x14] sm:$0xf]
        %v591 = vld [vmem:[#allocation7 + $0x18] sm:$0xf]
        %v592 = vld [vmem:[#allocation7 + $0x1c] sm:$0xf]
        %v593 = vld [vmem:[%s4] sm:$0x1]
        %v595 = vperm.slane %v593, 0
        %v605 = vunpack.c.l.b16 %v585
        %v606 = vunpack.c.l.b16 %v586
        %v607 = vunpack.c.l.b16 %v587
        %v608 = vunpack.c.l.b16 %v588
        %v609 = vunpack.c.l.b16 %v589
        %v610 = vunpack.c.l.b16 %v590
        %v611 = vunpack.c.l.b16 %v591
        %v612 = vunpack.c.l.b16 %v592
        %v613 = vpack.c.b16 %v606, %v605
        %v614 = vpack.c.b16 %v608, %v607
        %v615 = vpack.c.b16 %v610, %v609
        %v616 = vpack.c.b16 %v612, %v611
        %vm621 = vcmask 523264
        %v623 = vsel %vm621, %v584, 0
        %625 = vmatpush.bf16.msra.mxu0 0
        %626 = vmatpush.bf16.msra.mxu0 0
        %627 = vmatpush.bf16.msra.mxu0 0
        %628 = vmatpush.bf16.msra.mxu0 0
        %629 = vmatpush.bf16.msra.mxu0 %v616
        %630 = vmatpush.bf16.msra.mxu0 %v615
        %631 = vmatpush.bf16.msra.mxu0 %v614
        %632 = vmatpush.bf16.msra.mxu0 %v613
        %633 = vmatmul.bf16.gmra.mxu0 %v623
        %v634 = vpop.f32.mrf.mxu0
        %v635 = vadd.f32 %v595, %v634
        %v636 = vpop.f32.mrf.mxu0
        %637 = vdwg.mxu0
        %v638 = vmax.f32 %v635, 0.0
        %v639 = vpack.c.bf16 %v638, %v638
        %v640 = vld [vmem:[#allocation8] sm:$0xf]
        %v641 = vld [vmem:[#allocation8 + $0x4] sm:$0xf]
        %v642 = vld [vmem:[#allocation8 + $0x8] sm:$0xf]
        %v643 = vld [vmem:[#allocation8 + $0xc] sm:$0xf]
        %v644 = vld [vmem:[#allocation8 + $0x10] sm:$0xf]
        %v645 = vld [vmem:[#allocation8 + $0x14] sm:$0xf]
        %v646 = vld [vmem:[#allocation8 + $0x18] sm:$0xf]
        %v647 = vld [vmem:[#allocation8 + $0x1c] sm:$0xf]
        %v648 = vld [vmem:[%s6] sm:$0x1]
        %v650 = vperm.slane %v648, 0
        %v660 = vunpack.c.l.b16 %v640
        %v661 = vunpack.c.l.b16 %v641
        %v662 = vunpack.c.l.b16 %v642
        %v663 = vunpack.c.l.b16 %v643
        %v664 = vunpack.c.l.b16 %v644
        %v665 = vunpack.c.l.b16 %v645
        %v666 = vunpack.c.l.b16 %v646
        %v667 = vunpack.c.l.b16 %v647
        %v668 = vpack.c.b16 %v661, %v660
        %v669 = vpack.c.b16 %v663, %v662
        %v670 = vpack.c.b16 %v665, %v664
        %v671 = vpack.c.b16 %v667, %v666
        %v677 = vsel %vm621, %v639, 0
        %679 = vmatpush.bf16.msra.mxu0 0
        %680 = vmatpush.bf16.msra.mxu0 0
        %681 = vmatpush.bf16.msra.mxu0 0
        %682 = vmatpush.bf16.msra.mxu0 0
        %683 = vmatpush.bf16.msra.mxu0 %v671
        %684 = vmatpush.bf16.msra.mxu0 %v670
        %685 = vmatpush.bf16.msra.mxu0 %v669
        %686 = vmatpush.bf16.msra.mxu0 %v668
        %687 = vmatmul.bf16.gmra.mxu0 %v677
        %v688 = vpop.f32.mrf.mxu0
        %v689 = vadd.f32 %v650, %v688
        %v690 = vpop.f32.mrf.mxu0
        %691 = vdwg.mxu0
        %v692 = vmax.f32 %v689, 0.0
        %v693 = vpack.c.bf16 %v692, %v692
        %v694 = vld [vmem:[#allocation10] sm:$0xf]
        %v695 = vld [vmem:[#allocation10 + $0x4] sm:$0xf]
        %v696 = vld [vmem:[#allocation10 + $0x8] sm:$0xf]
        %v697 = vld [vmem:[#allocation10 + $0xc] sm:$0xf]
        %v698 = vld [vmem:[#allocation10 + $0x10] sm:$0xf]
        %v699 = vld [vmem:[#allocation10 + $0x14] sm:$0xf]
        %v700 = vld [vmem:[#allocation10 + $0x18] sm:$0xf]
        %v701 = vld [vmem:[#allocation10 + $0x1c] sm:$0xf]
        %v702 = vld [vmem:[%s8] sm:$0x1]
        %v704 = vperm.slane %v702, 0
        %v714 = vunpack.c.l.b16 %v694
        %v715 = vunpack.c.l.b16 %v695
        %v716 = vunpack.c.l.b16 %v696
        %v717 = vunpack.c.l.b16 %v697
        %v718 = vunpack.c.l.b16 %v698
        %v719 = vunpack.c.l.b16 %v699
        %v720 = vunpack.c.l.b16 %v700
        %v721 = vunpack.c.l.b16 %v701
        %v722 = vpack.c.b16 %v715, %v714
        %v723 = vpack.c.b16 %v717, %v716
        %v724 = vpack.c.b16 %v719, %v718
        %v725 = vpack.c.b16 %v721, %v720
        %v731 = vsel %vm621, %v693, 0
        %733 = vmatpush.bf16.msra.mxu0 0
        %734 = vmatpush.bf16.msra.mxu0 0
        %735 = vmatpush.bf16.msra.mxu0 0
        %736 = vmatpush.bf16.msra.mxu0 0
        %737 = vmatpush.bf16.msra.mxu0 %v725
        %738 = vmatpush.bf16.msra.mxu0 %v724
        %739 = vmatpush.bf16.msra.mxu0 %v723
        %740 = vmatpush.bf16.msra.mxu0 %v722
        %741 = vmatmul.bf16.gmra.mxu0 %v731
        %v742 = vpop.f32.mrf.mxu0
        %v743 = vadd.f32 %v704, %v742
        %v744 = vpop.f32.mrf.mxu0
        %745 = vdwg.mxu0
        %v746 = vmax.f32 %v743, 0.0
        %v747 = vpack.c.bf16 %v746, %v746
        %v748 = vld [vmem:[#allocation11] sm:$0xf]
        %v749 = vld [vmem:[#allocation11 + $0x4] sm:$0xf]
        %v750 = vld [vmem:[#allocation11 + $0x8] sm:$0xf]
        %v751 = vld [vmem:[#allocation11 + $0xc] sm:$0xf]
        %v752 = vld [vmem:[#allocation11 + $0x10] sm:$0xf]
        %v753 = vld [vmem:[#allocation11 + $0x14] sm:$0xf]
        %v754 = vld [vmem:[#allocation11 + $0x18] sm:$0xf]
        %v755 = vld [vmem:[#allocation11 + $0x1c] sm:$0xf]
        %v756 = vld [vmem:[%s10] sm:$0x1]
        %v758 = vperm.slane %v756, 0
        %v768 = vunpack.c.l.b16 %v748
        %v769 = vunpack.c.l.b16 %v749
        %v770 = vunpack.c.l.b16 %v750
        %v771 = vunpack.c.l.b16 %v751
        %v772 = vunpack.c.l.b16 %v752
        %v773 = vunpack.c.l.b16 %v753
        %v774 = vunpack.c.l.b16 %v754
        %v775 = vunpack.c.l.b16 %v755
        %v776 = vpack.c.b16 %v769, %v768
        %v777 = vpack.c.b16 %v771, %v770
        %v778 = vpack.c.b16 %v773, %v772
        %v779 = vpack.c.b16 %v775, %v774
        %v785 = vsel %vm621, %v747, 0
        %787 = vmatpush.bf16.msra.mxu0 0
        %788 = vmatpush.bf16.msra.mxu0 0
        %789 = vmatpush.bf16.msra.mxu0 0
        %790 = vmatpush.bf16.msra.mxu0 0
        %791 = vmatpush.bf16.msra.mxu0 %v779
        %792 = vmatpush.bf16.msra.mxu0 %v778
        %793 = vmatpush.bf16.msra.mxu0 %v777
        %794 = vmatpush.bf16.msra.mxu0 %v776
        %795 = vmatmul.bf16.gmra.mxu0 %v785
        %v796 = vpop.f32.mrf.mxu0
        %v797 = vadd.f32 %v758, %v796
        %v798 = vpop.f32.mrf.mxu0
        %799 = vdwg.mxu0
        %v800 = vpack.c.bf16 %v797, %v797
        %801 = vst [vmem:[%s536] sm:$0xf] %v800
        %v802 = vrot.slane %v797, 4
        %v803 = vadd.f32 %v797, %v802
        %v804 = vrot.slane %v803, 2
        %v805 = vadd.f32 %v803, %v804
        %v806 = vrot.slane %v805, 1
        %v807 = vadd.f32 %v805, %v806
        %808 = vst [vmem:[%s542] sm:$0x1] %v807
        %s809 = sand.u32 %s296, 1
        %s810 = scalar_lea.sflag [#allocation4], %s809
        %s811 = sand.u32 %s296, 1
        %s812 = smul.addr %s811, 4
        %s813 = scalar_lea.vmem [#allocation13], %s812
        %s814 = sand.u32 %s324, 1
        %s815 = scalar_lea.sflag [#allocation15], %s814
        %s816 = sand.u32 %s324, 1
        %s817 = scalar_lea.vmem [#allocation14], %s816
        // Predicated region
        $region89: #{tpu_custom_call.1} parent=63 // pred_check
          %p818 = pneg %p306
        $region90: #{tpu_custom_call.1} parent=63 // pred_check_branch
          %820 = sbr.rel (%p818) target = $region92
        $region91: #{tpu_custom_call.1} parent=63 // pred_region
          %822 = vsyncadd %s810, 0
          %s823 = sadd.s32 %s41, %s40
          %s824 = smul.addr %s823, 4
          %s825 = scalar_lea.hbm %s11, %s824
          %s827 = sshll.u32 %s813, 4
          %s828 = int_to_ptr.vmem [resolvable:$true] %s827
          %s829 = sshll.u32 %s825, 4
          %s830 = int_to_ptr.hbm [resolvable:$true] %s829
          %832 = dma.vmem_to_hbm [thread:$0]  %s828, 64, %s830, %s810
        $region92: #{tpu_custom_call.1} parent=63 // pred_fallthru
          _
        // Predicated region
        $region93: #{tpu_custom_call.1} parent=63 // pred_check
          %p833 = pneg %p334
        $region94: #{tpu_custom_call.1} parent=63 // pred_check_branch
          %835 = sbr.rel (%p833) target = $region96
        $region95: #{tpu_custom_call.1} parent=63 // pred_region
          %837 = vsyncadd %s815, 0
          %s838 = sadd.s32 %s41, %s40
          %s839 = scalar_lea.hbm %s12, %s838
          %s841 = sshll.u32 %s817, 4
          %s842 = int_to_ptr.vmem [resolvable:$true] %s841
          %s843 = sshll.u32 %s839, 4
          %s844 = int_to_ptr.hbm [resolvable:$true] %s843
          %846 = dma.vmem_to_hbm [thread:$0]  %s842, 16, %s844, %s815
        $region96: #{tpu_custom_call.1} parent=63 // pred_fallthru
          _
      $region64: #{tpu_custom_call.1} parent=5 // pred_fallthru
        _
      %p847 = scmp.le.s32.totalorder 2, %s31
      // Predicated region
      $region97: #{tpu_custom_call.1} parent=5 // pred_check
        %p848 = pneg %p847
      $region98: #{tpu_custom_call.1} parent=5 // pred_check_branch
        %850 = sbr.rel (%p848) target = $region100
      $region99: #{tpu_custom_call.1} parent=5 // pred_region
        %s851 = ssub.s32 %s31, 2
        // Predicated region
        $region101: #{tpu_custom_call.1} parent=99 // pred_check
          %p852 = pneg %p312
        $region102: #{tpu_custom_call.1} parent=99 // pred_check_branch
          %854 = sbr.rel (%p852) target = $region104
        $region103: #{tpu_custom_call.1} parent=99 // pred_region
          %s855 = sand.u32 %s297, 1
          %s856 = scalar_lea.sflag [#allocation4], %s855
          %s857 = sand.u32 %s297, 1
          %s858 = smul.addr %s857, 4
          %s859 = scalar_lea.vmem [#allocation13], %s858
          %861 = dma.done %s856, 64
        $region104: #{tpu_custom_call.1} parent=99 // pred_fallthru
          _
        // Predicated region
        $region105: #{tpu_custom_call.1} parent=99 // pred_check
          %p862 = pneg %p340
        $region106: #{tpu_custom_call.1} parent=99 // pred_check_branch
          %864 = sbr.rel (%p862) target = $region108
        $region107: #{tpu_custom_call.1} parent=99 // pred_region
          %s865 = sand.u32 %s325, 1
          %s866 = scalar_lea.sflag [#allocation15], %s865
          %s867 = sand.u32 %s325, 1
          %s868 = scalar_lea.vmem [#allocation14], %s867
          %870 = dma.done %s866, 16
        $region108: #{tpu_custom_call.1} parent=99 // pred_fallthru
          _
      $region100: #{tpu_custom_call.1} parent=5 // pred_fallthru
        _
    $region6: #{tpu_custom_call.1} parent=1 // loop_footer
      %s35 = sadd.s32 1, %s31
    $region7: #{tpu_custom_call.1} parent=1 // loop_footer_branch
      %30 = sbr.rel target = $region3
    $region8: #{tpu_custom_call.1} parent=1 // loop_exit
      _
    %871 = vsyncpa [#allocation3], 1
    %s872 = scalar_lea.sflag [#allocation3], 1
    %873 = vsyncpa %s872, 1
    %874 = vsyncpa [#allocation6], 1
    %875 = vsyncpa [#allocation9], 1
    %876 = vsyncpa [#allocation12], 1
    %877 = vsyncpa [#allocation4], 1
    %s878 = scalar_lea.sflag [#allocation4], 1
    %879 = vsyncpa %s878, 1
    %880 = vsyncpa [#allocation15], 1
    %s881 = scalar_lea.sflag [#allocation15], 1
    %882 = vsyncpa %s881, 1

</llo_original>
